<compile_context>
chip_gen: v5e
topology: v5e:2x2
jax: 0.10.0
libtpu: 0.0.40
codegen_flags: <defaults>
</compile_context>

<pallas_src>
import math

import jax
import jax.numpy as jnp
from jax.experimental import pallas as pl
from jax.experimental.pallas import tpu as pltpu


def _reverse_affine_kernel(z_ref, s_ref, t_ref, zo_ref):
    # Reverse(flow).forward(z) == flow.inverse(z):  (z - t) * exp(-s)
    # exp(-s) runs on the EUP slot and is hidden under the VPU/store work,
    # so recomputing it per grid step is free; do NOT pre-scale in the wrapper.
    zo_ref[...] = (z_ref[...] - t_ref[...]) * jnp.exp(-s_ref[...])


def reverse_flow_forward(z, s, t, *, target_block_bytes=4 * 1024 * 1024):
    """Pallas-backed Reverse(AffineConstFlow).forward(z) == flow.inverse(z).

    Args:
      z: (B, D) input batch.
      s: (1, D) log-scale parameter of the wrapped flow.
      t: (1, D) shift parameter of the wrapped flow.
    Returns:
      (z_out, log_det) with z_out (B, D) and log_det (B,).
    """
    B, D = z.shape
    s = s.reshape(1, D)
    t = t.reshape(1, D)

    # log|det| does not depend on z -> compute in the wrapper (deletes an
    # entire (B,1) masked-store output stream from the kernel).
    log_det = jnp.full((B,), -jnp.sum(s), dtype=z.dtype)

    # --- lane-dense folding: if D is not a multiple of the 128-lane vreg
    # width, fold k consecutive batch rows into one row of width k*D and tile
    # the parameters accordingly.  Pure layout plumbing; math is unchanged.
    k = 1
    if D % 128 != 0:
        k_cand = 128 // math.gcd(D, 128)
        if B % k_cand == 0:
            k = k_cand
    Bw, Dw = B // k, D * k
    zw = z.reshape(Bw, Dw)
    sw = jnp.tile(s, (1, k))
    tw = jnp.tile(t, (1, k))

    # --- batch tile: biggest multiple-of-8 row count giving ~target bytes per
    # block (input + output are each double-buffered -> ~4 live buffers, well
    # inside the 32 MiB scoped VMEM limit even on v7x's 64 MiB VMEM).
    itemsize = jnp.dtype(z.dtype).itemsize
    rows = max(1, target_block_bytes // max(1, Dw * itemsize))
    if rows < Bw:
        TB = max(8, rows - (rows % 8))   # sublane-aligned partial tiling
    else:
        TB = Bw                          # whole (small) batch in one block
    grid = (pl.cdiv(Bw, TB),)

    cost = pl.CostEstimate(
        flops=2 * B * D,
        transcendentals=D * grid[0],
        bytes_accessed=(2 * B * D + 2 * D) * itemsize,
    )

    z_out = pl.pallas_call(
        _reverse_affine_kernel,
        out_shape=jax.ShapeDtypeStruct((Bw, Dw), z.dtype),
        grid=grid,
        in_specs=[
            pl.BlockSpec((TB, Dw), lambda i: (i, 0)),   # z tile
            pl.BlockSpec((1, Dw), lambda i: (0, 0)),    # s (broadcast)
            pl.BlockSpec((1, Dw), lambda i: (0, 0)),    # t (broadcast)
        ],
        out_specs=pl.BlockSpec((TB, Dw), lambda i: (i, 0)),
        compiler_params=pltpu.CompilerParams(
            dimension_semantics=("parallel",),          # batch axis -> both TCs on v7x
            vmem_limit_bytes=32 * 1024 * 1024,
        ),
        cost_estimate=cost,
    )(zw, sw, tw)

    return z_out.reshape(B, D), log_det


if __name__ == "__main__":
    key = jax.random.PRNGKey(0)
    # Small shapes consistent with the module (batch-major, hidden=32).
    # B=8 lets the lane-dense fold (k=4 -> 128 lanes) kick in.
    B, D = 8, 32

    z = jax.random.normal(key, (B, D), dtype=jnp.float32)
    # Deterministic parameters for the wrapped affine flow.
    # TODO(synk): abstract Flow has no concrete transform; Reverse is
    # exercised around an affine-constant flow as its concrete `flow`.
    s = (0.01 * jnp.arange(D, dtype=jnp.float32)).reshape(1, D)
    t = (0.10 * jnp.arange(D, dtype=jnp.float32) - 1.0).reshape(1, D)

    z_out, log_det = reverse_flow_forward(z, s, t)
    jax.block_until_ready((z_out, log_det))

    # Reference check against plain-JAX flow.inverse(z).
    ref_z = (z - t) * jnp.exp(-s)
    ref_ld = jnp.full((B,), -jnp.sum(s), dtype=jnp.float32)
    assert jnp.allclose(z_out, ref_z, atol=1e-5, rtol=1e-5)
    assert jnp.allclose(log_det, ref_ld, atol=1e-5, rtol=1e-5)

    print("KERNEL_OK")
</pallas_src>

<mosaic_0001>
module attributes {stable_mosaic.version = 11 : i64} {
  func.func @_reverse_affine_kernel(%arg0: i32, %arg1: memref<2x128xf32, #tpu.memory_space<vmem>>, %arg2: memref<1x128xf32, #tpu.memory_space<vmem>>, %arg3: memref<1x128xf32, #tpu.memory_space<vmem>>, %arg4: memref<2x128xf32, #tpu.memory_space<vmem>>) attributes {dimension_semantics = [#tpu.dimension_semantics<parallel>], iteration_bounds = array<i64: 1>, scalar_prefetch = 0 : i64, scratch_operands = 0 : i64, tpu.core_type = #tpu.core_type<tc>, window_params = [{transform_indices = @transform_0, window_bounds = array<i64: 2, 128>}, {pipeline_mode = #tpu.pipeline_mode<synchronous>, transform_indices = @transform_1, window_bounds = array<i64: 1, 128>}, {pipeline_mode = #tpu.pipeline_mode<synchronous>, transform_indices = @transform_2, window_bounds = array<i64: 1, 128>}, {transform_indices = @transform_3, window_bounds = array<i64: 2, 128>}]} {
    %c0 = arith.constant 0 : index
    %c0_0 = arith.constant 0 : index
    %0 = vector.load %arg1[%c0, %c0_0] : memref<2x128xf32, #tpu.memory_space<vmem>>, vector<2x128xf32>
    %c0_1 = arith.constant 0 : index
    %c0_2 = arith.constant 0 : index
    %1 = vector.load %arg3[%c0_1, %c0_2] : memref<1x128xf32, #tpu.memory_space<vmem>>, vector<1x128xf32>
    %2 = vector.broadcast %1 : vector<1x128xf32> to vector<2x128xf32>
    %3 = arith.subf %0, %2 : vector<2x128xf32>
    %c0_3 = arith.constant 0 : index
    %c0_4 = arith.constant 0 : index
    %4 = vector.load %arg2[%c0_3, %c0_4] : memref<1x128xf32, #tpu.memory_space<vmem>>, vector<1x128xf32>
    %cst = arith.constant 0.000000e+00 : f32
    %5 = vector.broadcast %cst : f32 to vector<1x128xf32>
    %6 = arith.subf %5, %4 : vector<1x128xf32>
    %7 = math.exp %6 : vector<1x128xf32>
    %8 = vector.broadcast %7 : vector<1x128xf32> to vector<2x128xf32>
    %9 = arith.mulf %3, %8 : vector<2x128xf32>
    %c0_5 = arith.constant 0 : index
    %c0_6 = arith.constant 0 : index
    %10 = vector.load %arg4[%c0_5, %c0_6] : memref<2x128xf32, #tpu.memory_space<vmem>>, vector<2x128xf32>
    tpu.vector_store %arg4[%c0_5, %c0_6], %9 {strides = array<i32>} : memref<2x128xf32, #tpu.memory_space<vmem>>, vector<2x128xf32>,
    return
  }
  func.func @transform_0(%arg0: i32) -> (i32, i32) {
    %c0_i32 = arith.constant 0 : i32
    %c0_i32_0 = arith.constant 0 : i32
    return %arg0, %c0_i32 : i32, i32
  }
  func.func @transform_1(%arg0: i32) -> (i32, i32) {
    %c0_i32 = arith.constant 0 : i32
    %c0_i32_0 = arith.constant 0 : i32
    %c0_i32_1 = arith.constant 0 : i32
    return %c0_i32, %c0_i32_0 : i32, i32
  }
  func.func @transform_2(%arg0: i32) -> (i32, i32) {
    %c0_i32 = arith.constant 0 : i32
    %c0_i32_0 = arith.constant 0 : i32
    %c0_i32_1 = arith.constant 0 : i32
    return %c0_i32, %c0_i32_0 : i32, i32
  }
  func.func @transform_3(%arg0: i32) -> (i32, i32) {
    %c0_i32 = arith.constant 0 : i32
    %c0_i32_0 = arith.constant 0 : i32
    return %arg0, %c0_i32 : i32, i32
  }
}

</mosaic_0001>

<llo_original>
// kernel: tpu_custom_call.1
$region0: #{tpu_custom_call.1}
  #allocation0 [shape = 'u32[]', space=smem, size = 0x4, offset = 0x4, fixed_abs, tag = 'smem constant byte address 0x4 - core index']
  #allocation1 [shape = 'u32[72,128]{1,0:T(1,128)}', space=vmem, size = 0x9000, scoped, tag = 'internal scratch']
  %s0 = inlined_call_operand.hbm [shape: f32[2,128], index: 0, kind: input, shape index: {}]
  %s1 = inlined_call_operand.hbm [shape: f32[1,128], index: 1, kind: input, shape index: {}]
  %s2 = inlined_call_operand.vmem [shape: f32[1,128], index: 2, kind: input, shape index: {}]
  %s3 = inlined_call_operand.hbm [shape: f32[2,128], index: 3, kind: output, shape index: {}]
  %s4 = sld [smem:[#allocation0]]
  $region30: #{tpu_custom_call.1} parent=0
    _
  %s6 = ssub.s32 1, %s4
  %s7 = scalar_select 0, %s6, %s4
  $region1: #{tpu_custom_call.1} parent=0
    #allocation2 [shape = 'u8[1024]{0}', space=vmem, size = 0x400, scoped, tag = 'input window, operand 0, single buffered']
    #allocation3 [shape = 's32[1]{0}', space=sflag, size = 0x4, scoped, tag = 'scoped memory for tpu_custom_call.1']
    #allocation4 [shape = 's32[1]{0}', space=sflag, size = 0x4, scoped, tag = 'scoped memory for tpu_custom_call.1']
    #allocation5 [shape = 'u8[512]{0}', space=vmem, size = 0x400, scoped, tag = 'input window, operand 1, single buffered']
    #allocation6 [shape = 's32[1]{0}', space=sflag, size = 0x4, scoped, tag = 'scoped memory for tpu_custom_call.1']
    #allocation7 [shape = 'u8[1024]{0}', space=vmem, size = 0x400, scoped, tag = 'output window, operand 0, single buffered']
    %8 = vsyncpa [#allocation3], 0
    %9 = vsyncpa [#allocation6], 0
    %10 = vsyncpa [#allocation4], 0
    // Predicated region
    $region2: #{tpu_custom_call.1} parent=1 // pred_check
      _
    $region3: #{tpu_custom_call.1} parent=1 // pred_check_branch
      %12 = sbr.rel (0) target = $region5
    $region4: #{tpu_custom_call.1} parent=1 // pred_region
      %14 = vsyncadd [#allocation3], 0
      %s16 = sshll.u32 %s0, 4
      %s17 = int_to_ptr.hbm [resolvable:$true] %s16
      %s18 = sshll.u32 [#allocation2], 4
      %s19 = int_to_ptr.vmem [resolvable:$true] %s18
      %21 = dma.hbm_to_vmem [thread:$0]  %s17, 32, %s19, [#allocation3]
    $region5: #{tpu_custom_call.1} parent=1 // pred_fallthru
      _
    // Predicated region
    $region6: #{tpu_custom_call.1} parent=1 // pred_check
      _
    $region7: #{tpu_custom_call.1} parent=1 // pred_check_branch
      %23 = sbr.rel (0) target = $region9
    $region8: #{tpu_custom_call.1} parent=1 // pred_region
      %25 = vsyncadd [#allocation6], 0
      %s27 = sshll.u32 %s1, 4
      %s28 = int_to_ptr.hbm [resolvable:$true] %s27
      %s29 = sshll.u32 [#allocation5], 4
      %s30 = int_to_ptr.vmem [resolvable:$true] %s29
      %32 = dma.hbm_to_vmem [thread:$0]  %s28, 16, %s30, [#allocation6]
    $region9: #{tpu_custom_call.1} parent=1 // pred_fallthru
      _
    // Predicated region
    $region10: #{tpu_custom_call.1} parent=1 // pred_check
      _
    $region11: #{tpu_custom_call.1} parent=1 // pred_check_branch
      %34 = sbr.rel (0) target = $region13
    $region12: #{tpu_custom_call.1} parent=1 // pred_region
      _
    $region13: #{tpu_custom_call.1} parent=1 // pred_fallthru
      _
    // Predicated region
    $region14: #{tpu_custom_call.1} parent=1 // pred_check
      _
    $region15: #{tpu_custom_call.1} parent=1 // pred_check_branch
      %36 = sbr.rel (0) target = $region17
    $region16: #{tpu_custom_call.1} parent=1 // pred_region
      %38 = dma.done [#allocation3], 32
    $region17: #{tpu_custom_call.1} parent=1 // pred_fallthru
      _
    // Predicated region
    $region18: #{tpu_custom_call.1} parent=1 // pred_check
      _
    $region19: #{tpu_custom_call.1} parent=1 // pred_check_branch
      %40 = sbr.rel (0) target = $region21
    $region20: #{tpu_custom_call.1} parent=1 // pred_region
      %42 = dma.done [#allocation6], 16
    $region21: #{tpu_custom_call.1} parent=1 // pred_fallthru
      _
    %v43 = vld [vmem:[#allocation2] sm:$0x3]
    %v44 = vld [vmem:[%s2] sm:$0x1]
    %v46 = vperm.slane %v44, 0
    %v48 = vsub.f32 %v43, %v46
    %v49 = vld [vmem:[#allocation5] sm:$0x1]
    %v50 = vsub.f32 0.0, %v49
    %v51 = vmul.f32 %v50, 1.442695
    %v52 = vpow.pop %v51
    %v54 = vperm.slane %v52, 0
    %v56 = vmul.f32 %v48, %v54
    %57 = vst [vmem:[#allocation7] sm:$0x3] %v56
    // Predicated region
    $region22: #{tpu_custom_call.1} parent=1 // pred_check
      _
    $region23: #{tpu_custom_call.1} parent=1 // pred_check_branch
      %59 = sbr.rel (0) target = $region25
    $region24: #{tpu_custom_call.1} parent=1 // pred_region
      %61 = vsyncadd [#allocation4], 0
      %s63 = sshll.u32 [#allocation7], 4
      %s64 = int_to_ptr.vmem [resolvable:$true] %s63
      %s65 = sshll.u32 %s3, 4
      %s66 = int_to_ptr.hbm [resolvable:$true] %s65
      %68 = dma.vmem_to_hbm [thread:$0]  %s64, 32, %s66, [#allocation4]
    $region25: #{tpu_custom_call.1} parent=1 // pred_fallthru
      _
    // Predicated region
    $region26: #{tpu_custom_call.1} parent=1 // pred_check
      _
    $region27: #{tpu_custom_call.1} parent=1 // pred_check_branch
      %70 = sbr.rel (0) target = $region29
    $region28: #{tpu_custom_call.1} parent=1 // pred_region
      %72 = dma.done [#allocation4], 32
    $region29: #{tpu_custom_call.1} parent=1 // pred_fallthru
      _
    %73 = vsyncpa [#allocation3], 1
    %74 = vsyncpa [#allocation6], 1
    %75 = vsyncpa [#allocation4], 1

</llo_original>
